<compile_context>
chip_gen: v7x
topology: tpu7x:2x2x1
jax: 0.10.0
libtpu: 0.0.40
codegen_flags: <defaults>
</compile_context>

<pallas_src>
import functools

import jax
import jax.numpy as jnp
from jax.experimental import pallas as pl
from jax.experimental.pallas import tpu as pltpu


def _round_up(x, m):
    return (x + m - 1) // m * m


def _conv_stats_kernel(w_ref, b_ref, p_ref, y_ref, sum_ref, sq_ref):
    """Pass 1: conv-as-matmul with lane-dense (Cout, Mtile) output + partial
    per-channel BN statistics for this tile.

    w_ref  : (Cout, Kpad)   conv weights, contraction on lanes
    b_ref  : (Cout, 1)      conv bias
    p_ref  : (Kpad, Mtile)  im2col patch tile (zero-padded K and M)
    y_ref  : (Cout, Mtile)  conv output tile (bias included)
    sum_ref, sq_ref : (Cout, 1) partial sum / sum-of-squares of the bias-free
        conv output. Zero-padded M columns contribute exactly zero, so the
        partial sums stay exact; the bias is folded in analytically in glue.
    """
    y0 = jnp.dot(w_ref[...], p_ref[...], preferred_element_type=jnp.float32)
    y_ref[...] = y0 + b_ref[...]
    sum_ref[...] = jnp.sum(y0, axis=1, keepdims=True)
    sq_ref[...] = jnp.sum(y0 * y0, axis=1, keepdims=True)


def _bn_lrelu_kernel(y_ref, scale_ref, shift_ref, o_ref, *, alpha):
    """Pass 2: folded batch-norm affine (one FMA) + LeakyReLU."""
    z = y_ref[...] * scale_ref[...] + shift_ref[...]
    o_ref[...] = jnp.where(z >= 0, z, alpha * z)


def _pick_m_tile(dhw, kpad, cout, vmem_budget_bytes=20 * 1024 * 1024):
    """Largest M tile (multiple of 128) whose double-buffered f32 footprint
    (patch tile + conv tile + output tile) stays within the VMEM budget."""
    m_tile = 128
    for cand in (2048, 1024, 512, 256, 128):
        if 2 * 4 * (kpad + 2 * cout) * cand <= vmem_budget_bytes:
            m_tile = cand
            break
    return min(m_tile, _round_up(dhw, 128))


def convolutional_block_3d(x_ncdhw, conv_w, conv_b, bn_gamma, bn_beta,
                           *, kernel_size, padding, alpha, eps=1e-5):
    """Forward pass of ConvolutionalBlockND (dimension=3, batch_norm=True).

    x_ncdhw : (N, Cin, D, H, W)      -- PyTorch NCDHW layout
    conv_w  : (Cout, Cin, K, K, K)   -- PyTorch Conv3d weight layout
    conv_b  : (Cout,)
    bn_gamma, bn_beta : (Cout,)
    Returns (N, Cout, D_out, H_out, W_out) in NCDHW.
    """
    n, cin, d, h, w = x_ncdhw.shape
    cout = conv_w.shape[0]
    k = kernel_size
    d_out = d + 2 * padding - (k - 1)
    h_out = h + 2 * padding - (k - 1)
    w_out = w + 2 * padding - (k - 1)
    dhw = d_out * h_out * w_out
    kflat = k * k * k * cin
    kpad = _round_up(kflat, 128)

    m_tile = _pick_m_tile(dhw, kpad, cout)
    m_pad = _round_up(dhw, m_tile)
    num_m_tiles = m_pad // m_tile

    # ---- glue: zero-pad spatial dims and im2col (NCDHW, offset-major / cin-minor) ----
    x = x_ncdhw.astype(jnp.float32)
    x_pad = jnp.pad(x, ((0, 0), (0, 0), (padding, padding),
                        (padding, padding), (padding, padding)))
    slices = []
    for kd in range(k):
        for kh in range(k):
            for kw in range(k):
                slices.append(x_pad[:, :, kd:kd + d_out, kh:kh + h_out,
                                    kw:kw + w_out])
    patches = jnp.stack(slices, axis=1)                # (N, K^3, Cin, Do, Ho, Wo)
    patches = patches.reshape(n, kflat, dhw)
    patches = jnp.pad(patches, ((0, 0), (0, kpad - kflat), (0, m_pad - dhw)))

    # weights: (Cout, Cin, K, K, K) -> (Cout, kd, kh, kw, Cin) -> (Cout, Kpad)
    w_mat = jnp.transpose(conv_w, (0, 2, 3, 4, 1)).reshape(cout, kflat)
    w_mat = jnp.pad(w_mat.astype(jnp.float32), ((0, 0), (0, kpad - kflat)))
    b_col = conv_b.astype(jnp.float32).reshape(cout, 1)

    # ---- pass 1: conv + partial BN stats (fully parallel grid) ----
    y_conv, psum, psq = pl.pallas_call(
        _conv_stats_kernel,
        out_shape=(
            jax.ShapeDtypeStruct((n, cout, m_pad), jnp.float32),
            jax.ShapeDtypeStruct((n, num_m_tiles, cout, 1), jnp.float32),
            jax.ShapeDtypeStruct((n, num_m_tiles, cout, 1), jnp.float32),
        ),
        grid_spec=pltpu.PrefetchScalarGridSpec(
            num_scalar_prefetch=0,
            grid=(n, num_m_tiles),
            in_specs=[
                pl.BlockSpec((cout, kpad), lambda b, t: (0, 0)),
                pl.BlockSpec((cout, 1), lambda b, t: (0, 0)),
                pl.BlockSpec((None, kpad, m_tile), lambda b, t: (b, 0, t)),
            ],
            out_specs=[
                pl.BlockSpec((None, cout, m_tile), lambda b, t: (b, 0, t)),
                pl.BlockSpec((None, None, cout, 1), lambda b, t: (b, t, 0, 0)),
                pl.BlockSpec((None, None, cout, 1), lambda b, t: (b, t, 0, 0)),
            ],
        ),
        compiler_params=pltpu.CompilerParams(
            dimension_semantics=("parallel", "parallel"),
            vmem_limit_bytes=32 * 1024 * 1024),
    )(w_mat, b_col, patches)

    # ---- glue: tiny reduction over (N, tiles); fold bias/gamma/beta into scale & shift ----
    m_true = jnp.float32(n * dhw)
    sum0 = jnp.sum(psum, axis=(0, 1)).reshape(cout)
    sumsq0 = jnp.sum(psq, axis=(0, 1)).reshape(cout)
    mean0 = sum0 / m_true
    var = jnp.maximum(sumsq0 / m_true - mean0 * mean0, 0.0)   # bias-invariant
    mean = mean0 + conv_b.astype(jnp.float32)                 # mean of (conv + bias)
    scale = bn_gamma.astype(jnp.float32) * jax.lax.rsqrt(var + eps)
    shift = bn_beta.astype(jnp.float32) - mean * scale
    scale_col = scale.reshape(cout, 1)
    shift_col = shift.reshape(cout, 1)

    # ---- pass 2: normalize + LeakyReLU (fully parallel grid) ----
    out_flat = pl.pallas_call(
        functools.partial(_bn_lrelu_kernel, alpha=alpha),
        out_shape=jax.ShapeDtypeStruct((n, cout, m_pad), jnp.float32),
        grid_spec=pltpu.PrefetchScalarGridSpec(
            num_scalar_prefetch=0,
            grid=(n, num_m_tiles),
            in_specs=[
                pl.BlockSpec((None, cout, m_tile), lambda b, t: (b, 0, t)),
                pl.BlockSpec((cout, 1), lambda b, t: (0, 0)),
                pl.BlockSpec((cout, 1), lambda b, t: (0, 0)),
            ],
            out_specs=pl.BlockSpec((None, cout, m_tile), lambda b, t: (b, 0, t)),
        ),
        compiler_params=pltpu.CompilerParams(
            dimension_semantics=("parallel", "parallel"),
            vmem_limit_bytes=32 * 1024 * 1024),
    )(y_conv, scale_col, shift_col)

    # Output is already channel-major: just slice off M padding and reshape.
    return out_flat[:, :, :dhw].reshape(n, cout, d_out, h_out, w_out)


if __name__ == "__main__":
    # Module hyper-parameters (dimension=3, batch_norm=True by default).
    in_channel, out_channel = 4, 8
    kernel_size, padding = 3, 1
    alpha = 0.05

    key = jax.random.PRNGKey(0)
    kx, kw, kb = jax.random.split(key, 3)
    x = jax.random.normal(kx, (2, in_channel, 8, 8, 8), dtype=jnp.float32)
    conv_w = 0.1 * jax.random.normal(
        kw, (out_channel, in_channel, kernel_size, kernel_size, kernel_size),
        dtype=jnp.float32)
    conv_b = 0.1 * jax.random.normal(kb, (out_channel,), dtype=jnp.float32)
    bn_gamma = jnp.ones((out_channel,), jnp.float32)   # PyTorch BN init
    bn_beta = jnp.zeros((out_channel,), jnp.float32)

    y = convolutional_block_3d(x, conv_w, conv_b, bn_gamma, bn_beta,
                               kernel_size=kernel_size, padding=padding,
                               alpha=alpha)
    y = jax.block_until_ready(y)
    assert y.shape == (2, out_channel, 8, 8, 8)

    # Reference check (pure JAX/XLA, f32): Conv3d + training-mode BN + LeakyReLU.
    ref = jax.lax.conv_general_dilated(
        x, conv_w, window_strides=(1, 1, 1),
        padding=[(padding, padding)] * 3,
        dimension_numbers=("NCDHW", "OIDHW", "NCDHW"),
        precision=jax.lax.Precision.HIGHEST)
    ref = ref + conv_b.reshape(1, -1, 1, 1, 1)
    mu = jnp.mean(ref, axis=(0, 2, 3, 4), keepdims=True)
    vr = jnp.mean((ref - mu) ** 2, axis=(0, 2, 3, 4), keepdims=True)
    ref = (ref - mu) * jax.lax.rsqrt(vr + 1e-5)
    ref = ref * bn_gamma.reshape(1, -1, 1, 1, 1) + bn_beta.reshape(1, -1, 1, 1, 1)
    ref = jnp.where(ref >= 0, ref, alpha * ref)
    err = float(jnp.max(jnp.abs(y - ref)))
    assert err < 2e-3, f"max abs error {err}"

    print("KERNEL_OK")
</pallas_src>

<mosaic_0001>
module attributes {stable_mosaic.version = 11 : i64} {
  func.func @_conv_stats_kernel(%arg0: i32, %arg1: i32, %arg2: memref<8x128xf32, #tpu.memory_space<vmem>>, %arg3: memref<8x1xf32, #tpu.memory_space<vmem>>, %arg4: memref<1x128x512xf32, #tpu.memory_space<vmem>>, %arg5: memref<1x8x512xf32, #tpu.memory_space<vmem>>, %arg6: memref<1x1x8x1xf32, #tpu.memory_space<vmem>>, %arg7: memref<1x1x8x1xf32, #tpu.memory_space<vmem>>) attributes {dimension_semantics = [#tpu.dimension_semantics<parallel>, #tpu.dimension_semantics<parallel>], iteration_bounds = array<i64: 2, 1>, scalar_prefetch = 0 : i64, scratch_operands = 0 : i64, tpu.core_type = #tpu.core_type<tc>, window_params = [{pipeline_mode = #tpu.pipeline_mode<synchronous>, transform_indices = @transform_0, window_bounds = array<i64: 8, 128>}, {pipeline_mode = #tpu.pipeline_mode<synchronous>, transform_indices = @transform_1, window_bounds = array<i64: 8, 1>}, {transform_indices = @transform_2, window_bounds = array<i64: 1, 128, 512>}, {transform_indices = @transform_3, window_bounds = array<i64: 1, 8, 512>}, {transform_indices = @transform_4, window_bounds = array<i64: 1, 1, 8, 1>}, {transform_indices = @transform_5, window_bounds = array<i64: 1, 1, 8, 1>}]} {
    %c0 = arith.constant 0 : index
    %c0_0 = arith.constant 0 : index
    %0 = vector.load %arg2[%c0, %c0_0] : memref<8x128xf32, #tpu.memory_space<vmem>>, vector<8x128xf32>
    %c0_1 = arith.constant 0 : index
    %c0_2 = arith.constant 0 : index
    %c0_3 = arith.constant 0 : index
    %1 = vector.load %arg4[%c0_1, %c0_2, %c0_3] : memref<1x128x512xf32, #tpu.memory_space<vmem>>, vector<1x128x512xf32>
    %2 = vector.shape_cast %1 : vector<1x128x512xf32> to vector<128x512xf32>
    %cst = arith.constant dense<0.000000e+00> : vector<8x512xf32>
    %3 = tpu.matmul %0, %2, %cst {dimension_numbers = #tpu.dot_dimension_numbers<[1], [0], [0], [1], [0, 0, 1, 1], [], []>} : vector<8x128xf32>, vector<128x512xf32>, vector<8x512xf32> -> vector<8x512xf32>
    %c0_4 = arith.constant 0 : index
    %c0_5 = arith.constant 0 : index
    %4 = vector.load %arg3[%c0_4, %c0_5] : memref<8x1xf32, #tpu.memory_space<vmem>>, vector<8x1xf32>
    %5 = vector.broadcast %4 : vector<8x1xf32> to vector<8x512xf32>
    %6 = arith.addf %3, %5 : vector<8x512xf32>
    %c0_6 = arith.constant 0 : index
    %c0_7 = arith.constant 0 : index
    %c0_8 = arith.constant 0 : index
    %7 = vector.load %arg5[%c0_6, %c0_7, %c0_8] : memref<1x8x512xf32, #tpu.memory_space<vmem>>, vector<1x8x512xf32>
    %8 = vector.shape_cast %7 : vector<1x8x512xf32> to vector<8x512xf32>
    %9 = vector.shape_cast %6 : vector<8x512xf32> to vector<1x8x512xf32>
    tpu.vector_store %arg5[%c0_6, %c0_7, %c0_8], %9 {strides = array<i32>} : memref<1x8x512xf32, #tpu.memory_space<vmem>>, vector<1x8x512xf32>,
    %cst_9 = arith.constant dense<0.000000e+00> : vector<8xf32>
    %10 = vector.multi_reduction <add>, %3, %cst_9 [1] : vector<8x512xf32> to vector<8xf32>
    %11 = vector.shape_cast %10 : vector<8xf32> to vector<8x1xf32>
    %c0_10 = arith.constant 0 : index
    %c0_11 = arith.constant 0 : index
    %c0_12 = arith.constant 0 : index
    %c0_13 = arith.constant 0 : index
    %12 = vector.load %arg6[%c0_10, %c0_11, %c0_12, %c0_13] : memref<1x1x8x1xf32, #tpu.memory_space<vmem>>, vector<1x1x8x1xf32>
    %13 = vector.shape_cast %12 : vector<1x1x8x1xf32> to vector<8x1xf32>
    %14 = vector.shape_cast %11 : vector<8x1xf32> to vector<1x1x8x1xf32>
    tpu.vector_store %arg6[%c0_10, %c0_11, %c0_12, %c0_13], %14 {strides = array<i32>} : memref<1x1x8x1xf32, #tpu.memory_space<vmem>>, vector<1x1x8x1xf32>,
    %15 = arith.mulf %3, %3 : vector<8x512xf32>
    %cst_14 = arith.constant dense<0.000000e+00> : vector<8xf32>
    %16 = vector.multi_reduction <add>, %15, %cst_14 [1] : vector<8x512xf32> to vector<8xf32>
    %17 = vector.shape_cast %16 : vector<8xf32> to vector<8x1xf32>
    %c0_15 = arith.constant 0 : index
    %c0_16 = arith.constant 0 : index
    %c0_17 = arith.constant 0 : index
    %c0_18 = arith.constant 0 : index
    %18 = vector.load %arg7[%c0_15, %c0_16, %c0_17, %c0_18] : memref<1x1x8x1xf32, #tpu.memory_space<vmem>>, vector<1x1x8x1xf32>
    %19 = vector.shape_cast %18 : vector<1x1x8x1xf32> to vector<8x1xf32>
    %20 = vector.shape_cast %17 : vector<8x1xf32> to vector<1x1x8x1xf32>
    tpu.vector_store %arg7[%c0_15, %c0_16, %c0_17, %c0_18], %20 {strides = array<i32>} : memref<1x1x8x1xf32, #tpu.memory_space<vmem>>, vector<1x1x8x1xf32>,
    return
  }
  func.func @transform_0(%arg0: i32, %arg1: i32) -> (i32, i32) {
    %c0_i32 = arith.constant 0 : i32
    %c0_i32_0 = arith.constant 0 : i32
    %c0_i32_1 = arith.constant 0 : i32
    return %c0_i32, %c0_i32_0 : i32, i32
  }
  func.func @transform_1(%arg0: i32, %arg1: i32) -> (i32, i32) {
    %c0_i32 = arith.constant 0 : i32
    %c0_i32_0 = arith.constant 0 : i32
    %c0_i32_1 = arith.constant 0 : i32
    return %c0_i32, %c0_i32_0 : i32, i32
  }
  func.func @transform_2(%arg0: i32, %arg1: i32) -> (i32, i32, i32) {
    %c0_i32 = arith.constant 0 : i32
    %c0_i32_0 = arith.constant 0 : i32
    return %arg0, %c0_i32, %arg1 : i32, i32, i32
  }
  func.func @transform_3(%arg0: i32, %arg1: i32) -> (i32, i32, i32) {
    %c0_i32 = arith.constant 0 : i32
    %c0_i32_0 = arith.constant 0 : i32
    return %arg0, %c0_i32, %arg1 : i32, i32, i32
  }
  func.func @transform_4(%arg0: i32, %arg1: i32) -> (i32, i32, i32, i32) {
    %c0_i32 = arith.constant 0 : i32
    %c0_i32_0 = arith.constant 0 : i32
    %c0_i32_1 = arith.constant 0 : i32
    return %arg0, %arg1, %c0_i32, %c0_i32_0 : i32, i32, i32, i32
  }
  func.func @transform_5(%arg0: i32, %arg1: i32) -> (i32, i32, i32, i32) {
    %c0_i32 = arith.constant 0 : i32
    %c0_i32_0 = arith.constant 0 : i32
    %c0_i32_1 = arith.constant 0 : i32
    return %arg0, %arg1, %c0_i32, %c0_i32_0 : i32, i32, i32, i32
  }
}

</mosaic_0001>

<llo_original>
// kernel: tpu_custom_call.1
$region0: #{tpu_custom_call.1}
  #allocation0 [shape = 'u32[]', space=smem, size = 0x4, offset = 0x4, fixed_abs, tag = 'smem constant byte address 0x4 - core index']
  #allocation1 [shape = 'u32[144,128]{1,0:T(1,128)}', space=vmem, size = 0x12000, scoped, tag = 'internal scratch']
  %s0 = inlined_call_operand.vmem [shape: f32[8,128], index: 0, kind: input, shape index: {}]
  %s1 = inlined_call_operand.vmem [shape: f32[8,1], index: 1, kind: input, shape index: {}]
  %s2 = inlined_call_operand.hbm [shape: f32[2,128,512], index: 2, kind: input, shape index: {}]
  %s3 = inlined_call_operand.hbm [shape: f32[2,8,512], index: 3, kind: output, shape index: {0}]
  %s4 = inlined_call_operand.vmem [shape: f32[2,1,8,1], index: 4, kind: output, shape index: {1}]
  %s5 = inlined_call_operand.vmem [shape: f32[2,1,8,1], index: 5, kind: output, shape index: {2}]
  %6 = xla_tuple %s3, %s4, %s5
  %s7 = sld [smem:[#allocation0]]
  $region65: #{tpu_custom_call.1} parent=0
    _
  %s9 = ssub.s32 1, %s7
  %s10 = scalar_select 0, %s9, %s7
  $region1: #{tpu_custom_call.1} parent=0
    #allocation2 [shape = 'u8[524288]{0}', space=vmem, size = 0x80000, scoped, tag = 'input window, operand 2']
    #allocation3 [shape = 's32[2]{0}', space=sflag, size = 0x8, scoped, tag = 'scoped memory for tpu_custom_call.1']
    #allocation4 [shape = 's32[2]{0}', space=sflag, size = 0x8, scoped, tag = 'scoped memory for tpu_custom_call.1']
    #allocation5 [shape = 'u8[32768]{0}', space=vmem, size = 0x8000, scoped, tag = 'output window, operand 0']
    %11 = vsyncpa [#allocation3], 0
    %s12 = scalar_lea.sflag [#allocation3], 1
    %13 = vsyncpa %s12, 0
    %14 = vsyncpa [#allocation4], 0
    %s15 = scalar_lea.sflag [#allocation4], 1
    %16 = vsyncpa %s15, 0
    loop: start=0, step=1, limit=4
    $region2: #{tpu_custom_call.1} parent=1 // loop_pre_header
      _
    $region3: #{tpu_custom_call.1} parent=1 // loop_header
      %s18 = sphi 0, %s22
      %p19 = scmp.ge.s32.totalorder %s18, 4
      %s25 = sphi 0, %s37
      %s26 = sphi 0, %s33
      %s27 = sphi 0, %s25
      %s28 = sphi 0, %s26
      %s29 = sphi 0, %s27
      %s30 = sphi 0, %s28
      %s38 = sphi 0, %s38
      %s40 = sphi 0, %s38
      %s41 = sphi 0, %s40
      %s55 = sphi 0, %s41
      %s59 = sphi 0, %s59
      %s61 = sphi 0, %s59
      %s62 = sphi 0, %s61
      %s76 = sphi 0, %s62
      %s84 = sphi 0, %s86
      %s87 = sphi 0, %s84
      %s88 = sphi 0, %s87
      %s104 = sphi 0, %s88
      %s112 = sphi 0, %s114
      %s115 = sphi 0, %s112
      %s116 = sphi 0, %s115
      %s132 = sphi 0, %s116
      %s140 = sphi 0, %s142
      %s143 = sphi 0, %s140
      %s144 = sphi 0, %s143
      %s160 = sphi 0, %s144
      %s168 = sphi 0, %s170
      %s171 = sphi 0, %s168
      %s172 = sphi 0, %s171
      %s188 = sphi 0, %s172
    $region4: #{tpu_custom_call.1} parent=1 // loop_header_branch
      %21 = sbr.rel (%p19) target = $region8
    $region5: #{tpu_custom_call.1} parent=1 // loop_body
      %s23 = ssub.s32 %s18, 1
      %s24 = ssub.s32 %s18, 2
      %s31 = sadd.s32 1, %s26
      %p32 = scmp.ge.s32.totalorder %s31, 1
      %s33 = scalar_select %p32, 0, %s31
      %s34 = sadd.s32 1, %s25
      %s35 = scalar_select %p32, %s34, %s25
      %p36 = scmp.ge.s32.totalorder %s35, 2
      %s37 = scalar_select %p36, 0, %s35
      %s39 = sadd.s32 %s38, 1
      %p42 = scmp.eq.s32.totalorder %s18, 1
      %p43 = scmp.ne.s32.totalorder %s38, %s40
      %p44 = scmp.eq.s32.totalorder %s18, 0
      %p45 = por %p43, %p44
      %p46 = scmp.ne.s32.totalorder %s38, %s40
      %p47 = scmp.eq.s32.totalorder %s23, 1
      %p48 = por %p46, %p47
      %p49 = scmp.ne.s32.totalorder %s40, %s41
      %p50 = scmp.eq.s32.totalorder %s23, 0
      %p51 = por %p49, %p50
      %p52 = scmp.ne.s32.totalorder %s40, %s41
      %p53 = scmp.eq.s32.totalorder %s24, 1
      %p54 = por %p52, %p53
      %p56 = scmp.ne.s32.totalorder %s41, %s55
      %p57 = scmp.eq.s32.totalorder %s24, 0
      %p58 = por %p56, %p57
      %s60 = sadd.s32 %s59, 1
      %p63 = scmp.eq.s32.totalorder %s18, 1
      %p64 = scmp.ne.s32.totalorder %s59, %s61
      %p65 = scmp.eq.s32.totalorder %s18, 0
      %p66 = por %p64, %p65
      %p67 = scmp.ne.s32.totalorder %s59, %s61
      %p68 = scmp.eq.s32.totalorder %s23, 1
      %p69 = por %p67, %p68
      %p70 = scmp.ne.s32.totalorder %s61, %s62
      %p71 = scmp.eq.s32.totalorder %s23, 0
      %p72 = por %p70, %p71
      %p73 = scmp.ne.s32.totalorder %s61, %s62
      %p74 = scmp.eq.s32.totalorder %s24, 1
      %p75 = por %p73, %p74
      %p77 = scmp.ne.s32.totalorder %s62, %s76
      %p78 = scmp.eq.s32.totalorder %s24, 0
      %p79 = por %p77, %p78
      %s80 = ssub.s32 %s25, %s37
      %s81 = ssub.s32 %s26, %s33
      %s82 = sor.u32 %s80, %s81
      %p83 = scmp.eq.s32.totalorder %s82, 0
      %s85 = sadd.s32 %s84, 1
      %s86 = scalar_select %p83, %s84, %s85
      %p89 = pneg %p83
      %p90 = scmp.eq.s32.totalorder %s18, 1
      %p91 = por %p89, %p90
      %p92 = scmp.ne.s32.totalorder %s84, %s87
      %p93 = scmp.eq.s32.totalorder %s18, 0
      %p94 = por %p92, %p93
      %p95 = scmp.ne.s32.totalorder %s84, %s87
      %p96 = scmp.eq.s32.totalorder %s23, 1
      %p97 = por %p95, %p96
      %p98 = scmp.ne.s32.totalorder %s87, %s88
      %p99 = scmp.eq.s32.totalorder %s23, 0
      %p100 = por %p98, %p99
      %p101 = scmp.ne.s32.totalorder %s87, %s88
      %p102 = scmp.eq.s32.totalorder %s24, 1
      %p103 = por %p101, %p102
      %p105 = scmp.ne.s32.totalorder %s88, %s104
      %p106 = scmp.eq.s32.totalorder %s24, 0
      %p107 = por %p105, %p106
      %s108 = ssub.s32 %s25, %s37
      %s109 = ssub.s32 %s26, %s33
      %s110 = sor.u32 %s108, %s109
      %p111 = scmp.eq.s32.totalorder %s110, 0
      %s113 = sadd.s32 %s112, 1
      %s114 = scalar_select %p111, %s112, %s113
      %p117 = pneg %p111
      %p118 = scmp.eq.s32.totalorder %s18, 1
      %p119 = por %p117, %p118
      %p120 = scmp.ne.s32.totalorder %s112, %s115
      %p121 = scmp.eq.s32.totalorder %s18, 0
      %p122 = por %p120, %p121
      %p123 = scmp.ne.s32.totalorder %s112, %s115
      %p124 = scmp.eq.s32.totalorder %s23, 1
      %p125 = por %p123, %p124
      %p126 = scmp.ne.s32.totalorder %s115, %s116
      %p127 = scmp.eq.s32.totalorder %s23, 0
      %p128 = por %p126, %p127
      %p129 = scmp.ne.s32.totalorder %s115, %s116
      %p130 = scmp.eq.s32.totalorder %s24, 1
      %p131 = por %p129, %p130
      %p133 = scmp.ne.s32.totalorder %s116, %s132
      %p134 = scmp.eq.s32.totalorder %s24, 0
      %p135 = por %p133, %p134
      %s136 = ssub.s32 %s25, %s37
      %s137 = ssub.s32 %s26, %s33
      %s138 = sor.u32 %s136, %s137
      %p139 = scmp.eq.s32.totalorder %s138, 0
      %s141 = sadd.s32 %s140, 1
      %s142 = scalar_select %p139, %s140, %s141
      %p145 = pneg %p139
      %p146 = scmp.eq.s32.totalorder %s18, 1
      %p147 = por %p145, %p146
      %p148 = scmp.ne.s32.totalorder %s140, %s143
      %p149 = scmp.eq.s32.totalorder %s18, 0
      %p150 = por %p148, %p149
      %p151 = scmp.ne.s32.totalorder %s140, %s143
      %p152 = scmp.eq.s32.totalorder %s23, 1
      %p153 = por %p151, %p152
      %p154 = scmp.ne.s32.totalorder %s143, %s144
      %p155 = scmp.eq.s32.totalorder %s23, 0
      %p156 = por %p154, %p155
      %p157 = scmp.ne.s32.totalorder %s143, %s144
      %p158 = scmp.eq.s32.totalorder %s24, 1
      %p159 = por %p157, %p158
      %p161 = scmp.ne.s32.totalorder %s144, %s160
      %p162 = scmp.eq.s32.totalorder %s24, 0
      %p163 = por %p161, %p162
      %s164 = ssub.s32 %s25, %s37
      %s165 = ssub.s32 %s26, %s33
      %s166 = sor.u32 %s164, %s165
      %p167 = scmp.eq.s32.totalorder %s166, 0
      %s169 = sadd.s32 %s168, 1
      %s170 = scalar_select %p167, %s168, %s169
      %p173 = pneg %p167
      %p174 = scmp.eq.s32.totalorder %s18, 1
      %p175 = por %p173, %p174
      %p176 = scmp.ne.s32.totalorder %s168, %s171
      %p177 = scmp.eq.s32.totalorder %s18, 0
      %p178 = por %p176, %p177
      %p179 = scmp.ne.s32.totalorder %s168, %s171
      %p180 = scmp.eq.s32.totalorder %s23, 1
      %p181 = por %p179, %p180
      %p182 = scmp.ne.s32.totalorder %s171, %s172
      %p183 = scmp.eq.s32.totalorder %s23, 0
      %p184 = por %p182, %p183
      %p185 = scmp.ne.s32.totalorder %s171, %s172
      %p186 = scmp.eq.s32.totalorder %s24, 1
      %p187 = por %p185, %p186
      %p189 = scmp.ne.s32.totalorder %s172, %s188
      %p190 = scmp.eq.s32.totalorder %s24, 0
      %p191 = por %p189, %p190
      %p192 = scmp.le.s32.totalorder 1, %s18
      %p193 = scmp.lt.s32.totalorder %s18, 3
      %p194 = pnand %p192, %p193
      %p195 = pneg %p194
      // Predicated region
      $region9: #{tpu_custom_call.1} parent=5 // pred_check
        _
      $region10: #{tpu_custom_call.1} parent=5 // pred_check_branch
        %197 = sbr.rel (%p194) target = $region12
      $region11: #{tpu_custom_call.1} parent=5 // pred_region
        %s198 = ssub.s32 %s18, 1
        // Predicated region
        $region13: #{tpu_custom_call.1} parent=11 // pred_check
          %p199 = pneg %p51
        $region14: #{tpu_custom_call.1} parent=11 // pred_check_branch
          %201 = sbr.rel (%p199) target = $region16
        $region15: #{tpu_custom_call.1} parent=11 // pred_region
          _
        $region16: #{tpu_custom_call.1} parent=11 // pred_fallthru
          _
        // Predicated region
        $region17: #{tpu_custom_call.1} parent=11 // pred_check
          %p202 = pneg %p72
        $region18: #{tpu_custom_call.1} parent=11 // pred_check_branch
          %204 = sbr.rel (%p202) target = $region20
        $region19: #{tpu_custom_call.1} parent=11 // pred_region
          _
        $region20: #{tpu_custom_call.1} parent=11 // pred_fallthru
          _
      $region12: #{tpu_custom_call.1} parent=5 // pred_fallthru
        _
      %p205 = scmp.lt.s32.totalorder %s18, 2
      // Predicated region
      $region21: #{tpu_custom_call.1} parent=5 // pred_check
        %p206 = pneg %p205
      $region22: #{tpu_custom_call.1} parent=5 // pred_check_branch
        %208 = sbr.rel (%p206) target = $region24
      $region23: #{tpu_custom_call.1} parent=5 // pred_region
        // Predicated region
        $region25: #{tpu_custom_call.1} parent=23 // pred_check
          %p209 = pneg %p94
        $region26: #{tpu_custom_call.1} parent=23 // pred_check_branch
          %211 = sbr.rel (%p209) target = $region28
        $region27: #{tpu_custom_call.1} parent=23 // pred_region
          %s212 = sand.u32 %s84, 1
          %s213 = scalar_lea.sflag [#allocation3], %s212
          %s214 = sand.u32 %s84, 1
          %s215 = smul.addr %s214, 512
          %s216 = scalar_lea.vmem [#allocation2], %s215
          %s217 = smul.u32 4, %s26
          %s219 = ssub.s32 8192, 8192
          %220 = vsyncadd %s213, %s219
          %s221 = smul.addr %s25, 64
          %s222 = sadd.s32 %s217, %s221
          %s223 = smul.addr %s222, 128
          %s224 = scalar_lea.hbm %s2, %s223
          %s225 = sshll.u32 %s216, 4
          %s226 = int_to_ptr.vmem [resolvable:$true] %s225
          %231 = dma.hbm_to_vmem [thread:$0]  %s224, 8192, %s226, %s213, 512, 512, 32
        $region28: #{tpu_custom_call.1} parent=23 // pred_fallthru
          _
      $region24: #{tpu_custom_call.1} parent=5 // pred_fallthru
        _
      %p232 = scmp.le.s32.totalorder 1, %s18
      %p233 = scmp.lt.s32.totalorder %s18, 3
      %p234 = pnand %p232, %p233
      %p235 = pneg %p234
      // Predicated region
      $region29: #{tpu_custom_call.1} parent=5 // pred_check
        _
      $region30: #{tpu_custom_call.1} parent=5 // pred_check_branch
        %237 = sbr.rel (%p234) target = $region32
      $region31: #{tpu_custom_call.1} parent=5 // pred_region
        %s238 = ssub.s32 %s18, 1
        %s239 = sand.u32 %s87, 1
        %s240 = scalar_lea.sflag [#allocation3], %s239
        %s241 = sand.u32 %s87, 1
        %s242 = smul.addr %s241, 512
        %s243 = scalar_lea.vmem [#allocation2], %s242
        // Predicated region
        $region33: #{tpu_custom_call.1} parent=31 // pred_check
          %p244 = pneg %p100
        $region34: #{tpu_custom_call.1} parent=31 // pred_check_branch
          %246 = sbr.rel (%p244) target = $region36
        $region35: #{tpu_custom_call.1} parent=31 // pred_region
          %247 = dma.done %s240, 8192
        $region36: #{tpu_custom_call.1} parent=31 // pred_fallthru
          _
        %p248 = pneg %p51
        %p249 = pneg %p48
        %p250 = pneg %p72
        %p251 = pneg %p69
        %s252 = sand.u32 %s87, 1
        %s253 = scalar_lea.sflag [#allocation3], %s252
        %s254 = sand.u32 %s87, 1
        %s255 = smul.addr %s254, 512
        %s256 = scalar_lea.vmem [#allocation2], %s255
        %p257 = pneg %p100
        %p258 = pneg %p97
        %p259 = pneg %p128
        %p260 = pneg %p125
        %s261 = sand.u32 %s115, 1
        %s262 = scalar_lea.sflag [#allocation4], %s261
        %s263 = sand.u32 %s115, 1
        %s264 = smul.addr %s263, 32
        %s265 = scalar_lea.vmem [#allocation5], %s264
        %p266 = pneg %p156
        %p267 = pneg %p153
        %p268 = scmp.lt.s32.totalorder %s27, 1
        %s269 = scalar_select %p268, %s27, 1
        %p270 = scmp.lt.s32.totalorder %s28, 0
        %s271 = scalar_select %p270, %s28, 0
        %s272 = sadd.s32 %s271, %s269
        %s273 = smul.addr %s272, 8
        %s274 = scalar_lea.vmem %s4, %s273
        %p275 = pneg %p184
        %p276 = pneg %p181
        %p277 = scmp.lt.s32.totalorder %s27, 1
        %s278 = scalar_select %p277, %s27, 1
        %p279 = scmp.lt.s32.totalorder %s28, 0
        %s280 = scalar_select %p279, %s28, 0
        %s281 = sadd.s32 %s280, %s278
        %s282 = smul.addr %s281, 8
        %s283 = scalar_lea.vmem %s5, %s282
        %s284 = smul.u32 4, %s28
        %s285 = smul.u32 4, %s28
        %p286 = scmp.lt.s32.totalorder %s27, 1
        %s287 = scalar_select %p286, %s27, 1
        %p288 = scmp.lt.s32.totalorder %s28, 0
        %s289 = scalar_select %p288, %s28, 0
        %s290 = sadd.s32 %s289, %s287
        %s291 = smul.addr %s290, 8
        %s292 = scalar_lea.vmem %s4, %s291
        %p293 = scmp.lt.s32.totalorder %s27, 1
        %s294 = scalar_select %p293, %s27, 1
        %p295 = scmp.lt.s32.totalorder %s28, 0
        %s296 = scalar_select %p295, %s28, 0
        %s297 = sadd.s32 %s296, %s294
        %s298 = smul.addr %s297, 8
        %s299 = scalar_lea.vmem %s5, %s298
        %v300 = vld [vmem:[%s0] sm:$0xff]
        %v301 = vld [vmem:[%s243] sm:$0xff]
        %v302 = vld [vmem:[%s243 + $0x8] sm:$0xff]
        %v303 = vld [vmem:[%s243 + $0x10] sm:$0xff]
        %v304 = vld [vmem:[%s243 + $0x18] sm:$0xff]
        %v305 = vld [vmem:[%s243 + $0x20] sm:$0xff]
        %v306 = vld [vmem:[%s243 + $0x28] sm:$0xff]
        %v307 = vld [vmem:[%s243 + $0x30] sm:$0xff]
        %v308 = vld [vmem:[%s243 + $0x38] sm:$0xff]
        %v309 = vld [vmem:[%s243 + $0x40] sm:$0xff]
        %v310 = vld [vmem:[%s243 + $0x48] sm:$0xff]
        %v311 = vld [vmem:[%s243 + $0x50] sm:$0xff]
        %v312 = vld [vmem:[%s243 + $0x58] sm:$0xff]
        %v313 = vld [vmem:[%s243 + $0x60] sm:$0xff]
        %v314 = vld [vmem:[%s243 + $0x68] sm:$0xff]
        %v315 = vld [vmem:[%s243 + $0x70] sm:$0xff]
        %v316 = vld [vmem:[%s243 + $0x78] sm:$0xff]
        %v317 = vld [vmem:[%s243 + $0x80] sm:$0xff]
        %v318 = vld [vmem:[%s243 + $0x88] sm:$0xff]
        %v319 = vld [vmem:[%s243 + $0x90] sm:$0xff]
        %v320 = vld [vmem:[%s243 + $0x98] sm:$0xff]
        %v321 = vld [vmem:[%s243 + $0xa0] sm:$0xff]
        %v322 = vld [vmem:[%s243 + $0xa8] sm:$0xff]
        %v323 = vld [vmem:[%s243 + $0xb0] sm:$0xff]
        %v324 = vld [vmem:[%s243 + $0xb8] sm:$0xff]
        %v325 = vld [vmem:[%s243 + $0xc0] sm:$0xff]
        %v326 = vld [vmem:[%s243 + $0xc8] sm:$0xff]
        %v327 = vld [vmem:[%s243 + $0xd0] sm:$0xff]
        %v328 = vld [vmem:[%s243 + $0xd8] sm:$0xff]
        %v329 = vld [vmem:[%s243 + $0xe0] sm:$0xff]
        %v330 = vld [vmem:[%s243 + $0xe8] sm:$0xff]
        %v331 = vld [vmem:[%s243 + $0xf0] sm:$0xff]
        %v332 = vld [vmem:[%s243 + $0xf8] sm:$0xff]
        %v333 = vld [vmem:[%s243 + $0x100] sm:$0xff]
        %v334 = vld [vmem:[%s243 + $0x108] sm:$0xff]
        %v335 = vld [vmem:[%s243 + $0x110] sm:$0xff]
        %v336 = vld [vmem:[%s243 + $0x118] sm:$0xff]
        %v337 = vld [vmem:[%s243 + $0x120] sm:$0xff]
        %v338 = vld [vmem:[%s243 + $0x128] sm:$0xff]
        %v339 = vld [vmem:[%s243 + $0x130] sm:$0xff]
        %v340 = vld [vmem:[%s243 + $0x138] sm:$0xff]
        %v341 = vld [vmem:[%s243 + $0x140] sm:$0xff]
        %v342 = vld [vmem:[%s243 + $0x148] sm:$0xff]
        %v343 = vld [vmem:[%s243 + $0x150] sm:$0xff]
        %v344 = vld [vmem:[%s243 + $0x158] sm:$0xff]
        %v345 = vld [vmem:[%s243 + $0x160] sm:$0xff]
        %v346 = vld [vmem:[%s243 + $0x168] sm:$0xff]
        %v347 = vld [vmem:[%s243 + $0x170] sm:$0xff]
        %v348 = vld [vmem:[%s243 + $0x178] sm:$0xff]
        %v349 = vld [vmem:[%s243 + $0x180] sm:$0xff]
        %v350 = vld [vmem:[%s243 + $0x188] sm:$0xff]
        %v351 = vld [vmem:[%s243 + $0x190] sm:$0xff]
        %v352 = vld [vmem:[%s243 + $0x198] sm:$0xff]
        %v353 = vld [vmem:[%s243 + $0x1a0] sm:$0xff]
        %v354 = vld [vmem:[%s243 + $0x1a8] sm:$0xff]
        %v355 = vld [vmem:[%s243 + $0x1b0] sm:$0xff]
        %v356 = vld [vmem:[%s243 + $0x1b8] sm:$0xff]
        %v357 = vld [vmem:[%s243 + $0x1c0] sm:$0xff]
        %v358 = vld [vmem:[%s243 + $0x1c8] sm:$0xff]
        %v359 = vld [vmem:[%s243 + $0x1d0] sm:$0xff]
        %v360 = vld [vmem:[%s243 + $0x1d8] sm:$0xff]
        %v361 = vld [vmem:[%s243 + $0x1e0] sm:$0xff]
        %v362 = vld [vmem:[%s243 + $0x1e8] sm:$0xff]
        %v363 = vld [vmem:[%s243 + $0x1f0] sm:$0xff]
        %v364 = vld [vmem:[%s243 + $0x1f8] sm:$0xff]
        %365 = vmatprep.subr.mxu0 %v302
        %366 = vmatpush1.msra.mxu0 %v301
        %367 = vmatprep.subr.mxu0 %v306
        %368 = vmatpush1.msra.mxu0 %v305
        %369 = vmatprep.subr.mxu0 %v310
        %370 = vmatpush1.msra.mxu0 %v309
        %371 = vmatprep.subr.mxu0 %v314
        %372 = vmatpush1.msra.mxu0 %v313
        %373 = vmatprep.subr.mxu0 %v318
        %374 = vmatpush1.msra.mxu0 %v317
        %375 = vmatprep.subr.mxu0 %v322
        %376 = vmatpush1.msra.mxu0 %v321
        %377 = vmatprep.subr.mxu0 %v326
        %378 = vmatpush1.msra.mxu0 %v325
        %379 = vmatprep.subr.mxu0 %v330
        %380 = vmatpush1.msra.mxu0 %v329
        %381 = vmatprep.subr.mxu0 %v334
        %382 = vmatpush1.msra.mxu0 %v333
        %383 = vmatprep.subr.mxu0 %v338
        %384 = vmatpush1.msra.mxu0 %v337
        %385 = vmatprep.subr.mxu0 %v342
        %386 = vmatpush1.msra.mxu0 %v341
        %387 = vmatprep.subr.mxu0 %v346
        %388 = vmatpush1.msra.mxu0 %v345
        %389 = vmatprep.subr.mxu0 %v350
        %390 = vmatpush1.msra.mxu0 %v349
        %391 = vmatprep.subr.mxu0 %v354
        %392 = vmatpush1.msra.mxu0 %v353
        %393 = vmatprep.subr.mxu0 %v358
        %394 = vmatpush1.msra.mxu0 %v357
        %395 = vmatprep.subr.mxu0 %v362
        %396 = vmatpush1.msra.mxu0 %v361
        %397 = vmatprep.subr.mxu0 0.0
        %398 = vmatpush1.msra.mxu0 0.0
        %399 = vmatprep.subr.mxu0 0.0
        %400 = vmatpush1.msra.mxu0 0.0
        %401 = vmatprep.subr.mxu0 0.0
        %402 = vmatpush1.msra.mxu0 0.0
        %403 = vmatprep.subr.mxu0 0.0
        %404 = vmatpush1.msra.mxu0 0.0
        %405 = vmatprep.subr.mxu0 0.0
        %406 = vmatpush1.msra.mxu0 0.0
        %407 = vmatprep.subr.mxu0 0.0
        %408 = vmatpush1.msra.mxu0 0.0
        %409 = vmatprep.subr.mxu0 0.0
        %410 = vmatpush1.msra.mxu0 0.0
        %411 = vmatprep.subr.mxu0 0.0
        %412 = vmatpush1.msra.mxu0 0.0
        %413 = vmatprep.subr.mxu0 0.0
        %414 = vmatpush1.msra.mxu0 0.0
        %415 = vmatprep.subr.mxu0 0.0
        %416 = vmatpush1.msra.mxu0 0.0
        %417 = vmatprep.subr.mxu0 0.0
        %418 = vmatpush1.msra.mxu0 0.0
        %419 = vmatprep.subr.mxu0 0.0
        %420 = vmatpush1.msra.mxu0 0.0
        %421 = vmatprep.subr.mxu0 0.0
        %422 = vmatpush1.msra.mxu0 0.0
        %423 = vmatprep.subr.mxu0 0.0
        %424 = vmatpush1.msra.mxu0 0.0
        %425 = vmatprep.subr.mxu0 0.0
        %426 = vmatpush1.msra.mxu0 0.0
        %427 = vmatprep.subr.mxu0 0.0
        %428 = vmatpush1.msra.mxu0 0.0
        %429 = vmatprep.mubr.f32.mxu0 0.0
        %430 = vmatmul.mubr.f32.gmra.mrb[0].mxu0 %v300
        %v431 = vpop.f32.mrb[0].mxu0
        %v432 = vadd.f32 0.0, %v431
        %v433 = vpop.f32.mrb[0].mxu0
        %v434 = vadd.f32 0.0, %v433
        %435 = vdwg.mxu0
        %436 = vmatprep.subr.mxu0 %v304
        %437 = vmatpush1.msra.mxu0 %v303
        %438 = vmatprep.subr.mxu0 %v308
        %439 = vmatpush1.msra.mxu0 %v307
        %440 = vmatprep.subr.mxu0 %v312
        %441 = vmatpush1.msra.mxu0 %v311
        %442 = vmatprep.subr.mxu0 %v316
        %443 = vmatpush1.msra.mxu0 %v315
        %444 = vmatprep.subr.mxu0 %v320
        %445 = vmatpush1.msra.mxu0 %v319
        %446 = vmatprep.subr.mxu0 %v324
        %447 = vmatpush1.msra.mxu0 %v323
        %448 = vmatprep.subr.mxu0 %v328
        %449 = vmatpush1.msra.mxu0 %v327
        %450 = vmatprep.subr.mxu0 %v332
        %451 = vmatpush1.msra.mxu0 %v331
        %452 = vmatprep.subr.mxu0 %v336
        %453 = vmatpush1.msra.mxu0 %v335
        %454 = vmatprep.subr.mxu0 %v340
        %455 = vmatpush1.msra.mxu0 %v339
        %456 = vmatprep.subr.mxu0 %v344
        %457 = vmatpush1.msra.mxu0 %v343
        %458 = vmatprep.subr.mxu0 %v348
        %459 = vmatpush1.msra.mxu0 %v347
        %460 = vmatprep.subr.mxu0 %v352
        %461 = vmatpush1.msra.mxu0 %v351
        %462 = vmatprep.subr.mxu0 %v356
        %463 = vmatpush1.msra.mxu0 %v355
        %464 = vmatprep.subr.mxu0 %v360
        %465 = vmatpush1.msra.mxu0 %v359
        %466 = vmatprep.subr.mxu0 %v364
        %467 = vmatpush1.msra.mxu0 %v363
        %468 = vmatprep.subr.mxu0 0.0
        %469 = vmatpush1.msra.mxu0 0.0
        %470 = vmatprep.subr.mxu0 0.0
        %471 = vmatpush1.msra.mxu0 0.0
        %472 = vmatprep.subr.mxu0 0.0
        %473 = vmatpush1.msra.mxu0 0.0
        %474 = vmatprep.subr.mxu0 0.0
        %475 = vmatpush1.msra.mxu0 0.0
        %476 = vmatprep.subr.mxu0 0.0
        %477 = vmatpush1.msra.mxu0 0.0
        %478 = vmatprep.subr.mxu0 0.0
        %479 = vmatpush1.msra.mxu0 0.0
        %480 = vmatprep.subr.mxu0 0.0
        %481 = vmatpush1.msra.mxu0 0.0
        %482 = vmatprep.subr.mxu0 0.0
        %483 = vmatpush1.msra.mxu0 0.0
        %484 = vmatprep.subr.mxu0 0.0
        %485 = vmatpush1.msra.mxu0 0.0
        %486 = vmatprep.subr.mxu0 0.0
        %487 = vmatpush1.msra.mxu0 0.0
        %488 = vmatprep.subr.mxu0 0.0
        %489 = vmatpush1.msra.mxu0 0.0
        %490 = vmatprep.subr.mxu0 0.0
        %491 = vmatpush1.msra.mxu0 0.0
        %492 = vmatprep.subr.mxu0 0.0
        %493 = vmatpush1.msra.mxu0 0.0
        %494 = vmatprep.subr.mxu0 0.0
        %495 = vmatpush1.msra.mxu0 0.0
        %496 = vmatprep.subr.mxu0 0.0
        %497 = vmatpush1.msra.mxu0 0.0
        %498 = vmatprep.subr.mxu0 0.0
        %499 = vmatpush1.msra.mxu0 0.0
        %500 = vmatprep.mubr.f32.mxu0 0.0
        %501 = vmatmul.mubr.f32.gmra.mrb[0].mxu0 %v300
        %v502 = vpop.f32.mrb[0].mxu0
        %v503 = vadd.f32 0.0, %v502
        %v504 = vpop.f32.mrb[0].mxu0
        %v505 = vadd.f32 0.0, %v504
        %506 = vdwg.mxu0
        %v507 = vld [vmem:[%s1] sm:$0xff]
        %509 = vset.pattern.permute.xlu0 0
        %510 = vperm.xlu0 %509, %v507
        %v511 = vpop.permute.xlu0 %510
        %v513 = vadd.f32 %v432, %v511
        %v514 = vadd.f32 %v434, %v511
        %v515 = vadd.f32 %v503, %v511
        %v516 = vadd.f32 %v505, %v511
        %517 = vst [vmem:[%s265] sm:$0xff] %v513
        %518 = vst [vmem:[%s265 + $0x8] sm:$0xff] %v514
        %519 = vst [vmem:[%s265 + $0x10] sm:$0xff] %v515
        %520 = vst [vmem:[%s265 + $0x18] sm:$0xff] %v516
        %v521 = vadd.f32 %v432, %v434
        %v522 = vadd.f32 %v521, %v503
        %v523 = vadd.f32 %v522, %v505
        %524 = vadd.xlane.f32.xlu0 %v523
        %v525 = vpop.xlane.xlu0 %524
        %vm526 = vcmask 7168
        %527 = vst.msk [vmem:[%s292] sm:$0xff] %vm526, %v525
        %v528 = vmul.f32 %v432, %v432
        %v529 = vmul.f32 %v434, %v434
        %v530 = vmul.f32 %v503, %v503
        %v531 = vmul.f32 %v505, %v505
        %v532 = vadd.f32 %v528, %v529
        %v533 = vadd.f32 %v532, %v530
        %v534 = vadd.f32 %v533, %v531
        %535 = vadd.xlane.f32.xlu0 %v534
        %v536 = vpop.xlane.xlu0 %535
        %537 = vst.msk [vmem:[%s299] sm:$0xff] %vm526, %v536
        %s538 = sand.u32 %s115, 1
        %s539 = scalar_lea.sflag [#allocation4], %s538
        %s540 = sand.u32 %s115, 1
        %s541 = smul.addr %s540, 32
        %s542 = scalar_lea.vmem [#allocation5], %s541
        %p543 = scmp.lt.s32.totalorder %s27, 1
        %s544 = scalar_select %p543, %s27, 1
        %p545 = scmp.lt.s32.totalorder %s28, 0
        %s546 = scalar_select %p545, %s28, 0
        %s547 = sadd.s32 %s546, %s544
        %s548 = smul.addr %s547, 8
        %s549 = scalar_lea.vmem %s4, %s548
        %p550 = scmp.lt.s32.totalorder %s27, 1
        %s551 = scalar_select %p550, %s27, 1
        %p552 = scmp.lt.s32.totalorder %s28, 0
        %s553 = scalar_select %p552, %s28, 0
        %s554 = sadd.s32 %s553, %s551
        %s555 = smul.addr %s554, 8
        %s556 = scalar_lea.vmem %s5, %s555
        // Predicated region
        $region37: #{tpu_custom_call.1} parent=31 // pred_check
          %p557 = pneg %p125
        $region38: #{tpu_custom_call.1} parent=31 // pred_check_branch
          %559 = sbr.rel (%p557) target = $region40
        $region39: #{tpu_custom_call.1} parent=31 // pred_region
          %s560 = smul.u32 4, %s28
          %s562 = ssub.s32 512, 512
          %563 = vsyncadd %s539, %s562
          %s564 = smul.addr %s27, 4
          %s565 = sadd.s32 %s560, %s564
          %s566 = smul.addr %s565, 128
          %s567 = scalar_lea.hbm %s3, %s566
          %s569 = sshll.u32 %s542, 4
          %s570 = int_to_ptr.vmem [resolvable:$true] %s569
          %572 = dma.vmem_to_hbm [thread:$0]  %s570, 512, %s567, %s539
        $region40: #{tpu_custom_call.1} parent=31 // pred_fallthru
          _
        // Predicated region
        $region41: #{tpu_custom_call.1} parent=31 // pred_check
          %p573 = pneg %p153
        $region42: #{tpu_custom_call.1} parent=31 // pred_check_branch
          %575 = sbr.rel (%p573) target = $region44
        $region43: #{tpu_custom_call.1} parent=31 // pred_region
          _
        $region44: #{tpu_custom_call.1} parent=31 // pred_fallthru
          _
        // Predicated region
        $region45: #{tpu_custom_call.1} parent=31 // pred_check
          %p576 = pneg %p181
        $region46: #{tpu_custom_call.1} parent=31 // pred_check_branch
          %578 = sbr.rel (%p576) target = $region48
        $region47: #{tpu_custom_call.1} parent=31 // pred_region
          _
        $region48: #{tpu_custom_call.1} parent=31 // pred_fallthru
          _
      $region32: #{tpu_custom_call.1} parent=5 // pred_fallthru
        _
      %p579 = scmp.le.s32.totalorder 2, %s18
      // Predicated region
      $region49: #{tpu_custom_call.1} parent=5 // pred_check
        %p580 = pneg %p579
      $region50: #{tpu_custom_call.1} parent=5 // pred_check_branch
        %582 = sbr.rel (%p580) target = $region52
      $region51: #{tpu_custom_call.1} parent=5 // pred_region
        %s583 = ssub.s32 %s18, 2
        // Predicated region
        $region53: #{tpu_custom_call.1} parent=51 // pred_check
          %p584 = pneg %p131
        $region54: #{tpu_custom_call.1} parent=51 // pred_check_branch
          %586 = sbr.rel (%p584) target = $region56
        $region55: #{tpu_custom_call.1} parent=51 // pred_region
          %s587 = sand.u32 %s116, 1
          %s588 = scalar_lea.sflag [#allocation4], %s587
          %s589 = sand.u32 %s116, 1
          %s590 = smul.addr %s589, 32
          %s591 = scalar_lea.vmem [#allocation5], %s590
          %592 = dma.done %s588, 512
        $region56: #{tpu_custom_call.1} parent=51 // pred_fallthru
          _
        // Predicated region
        $region57: #{tpu_custom_call.1} parent=51 // pred_check
          %p593 = pneg %p159
        $region58: #{tpu_custom_call.1} parent=51 // pred_check_branch
          %595 = sbr.rel (%p593) target = $region60
        $region59: #{tpu_custom_call.1} parent=51 // pred_region
          %p596 = scmp.lt.s32.totalorder %s29, 1
          %s597 = scalar_select %p596, %s29, 1
          %p598 = scmp.lt.s32.totalorder %s30, 0
          %s599 = scalar_select %p598, %s30, 0
          %s600 = sadd.s32 %s599, %s597
          %s601 = smul.addr %s600, 8
          %s602 = scalar_lea.vmem %s4, %s601
        $region60: #{tpu_custom_call.1} parent=51 // pred_fallthru
          _
        // Predicated region
        $region61: #{tpu_custom_call.1} parent=51 // pred_check
          %p603 = pneg %p187
        $region62: #{tpu_custom_call.1} parent=51 // pred_check_branch
          %605 = sbr.rel (%p603) target = $region64
        $region63: #{tpu_custom_call.1} parent=51 // pred_region
          %p606 = scmp.lt.s32.totalorder %s29, 1
          %s607 = scalar_select %p606, %s29, 1
          %p608 = scmp.lt.s32.totalorder %s30, 0
          %s609 = scalar_select %p608, %s30, 0
          %s610 = sadd.s32 %s609, %s607
          %s611 = smul.addr %s610, 8
          %s612 = scalar_lea.vmem %s5, %s611
        $region64: #{tpu_custom_call.1} parent=51 // pred_fallthru
          _
      $region52: #{tpu_custom_call.1} parent=5 // pred_fallthru
        _
    $region6: #{tpu_custom_call.1} parent=1 // loop_footer
      %s22 = sadd.s32 1, %s18
    $region7: #{tpu_custom_call.1} parent=1 // loop_footer_branch
      %17 = sbr.rel target = $region3
    $region8: #{tpu_custom_call.1} parent=1 // loop_exit
      _
    %613 = vsyncpa [#allocation3], 1
    %s614 = scalar_lea.sflag [#allocation3], 1
    %615 = vsyncpa %s614, 1
    %616 = vsyncpa [#allocation4], 1
    %s617 = scalar_lea.sflag [#allocation4], 1
    %618 = vsyncpa %s617, 1

</llo_original>
